<compile_context>
chip_gen: v5e
topology: v5e:2x2
jax: 0.10.0
libtpu: 0.0.40
codegen_flags: <defaults>
</compile_context>

<pallas_src>
import functools

import jax
import jax.numpy as jnp
from jax import lax
from jax.experimental import pallas as pl
from jax.experimental.pallas import tpu as pltpu


# ----------------------------------------------------------------------------
# Fused kernel: bilinear sample (accumulated over H*W tiles) + reshape + MLP
# ----------------------------------------------------------------------------
def _fused_kernel(q_ref, zf_ref, w12_ref, b12_ref, wr1_ref, br1_ref,
                  wr2_ref, br2_ref, w3_ref, b3_ref,
                  qxy_ref, r_ref,
                  acc_ref,
                  *, height, width, thw, n, c):
    k = pl.program_id(0)
    nk = pl.num_programs(0)

    @pl.when(k == 0)
    def _init():
        acc_ref[...] = jnp.zeros_like(acc_ref)

    # ---- bilinear one-hot weights for this H*W tile -------------------------
    x = q_ref[:, 0:1]                          # (N, 1) float32
    y = q_ref[:, 1:2]
    # tensor.int() truncates toward zero; float->int cast in JAX does the same.
    x1 = x.astype(jnp.int32)
    y1 = y.astype(jnp.int32)
    x2 = x1 + 1                                # before clamping x1 (as in torch)
    y2 = y1 + 1
    x1 = jnp.clip(x1, 0, height - 1)
    y1 = jnp.clip(y1, 0, width - 1)
    x2 = jnp.clip(x2, 0, height - 1)
    y2 = jnp.clip(y2, 0, width - 1)

    dx = x - x1.astype(jnp.float32)
    dy = y - y1.astype(jnp.float32)
    bw11 = (1.0 - dx) * (1.0 - dy)
    bw21 = dx * (1.0 - dy)
    bw12 = (1.0 - dx) * dy
    bw22 = dx * dy

    # flat corner addresses (computed once per step, cheap VPU work)
    a11 = x1 * width + y1
    a21 = x2 * width + y1
    a12 = x1 * width + y2
    a22 = x2 * width + y2

    # single iota per tile; weights accumulated in one expression (coincident
    # clamped corners add up, exactly matching the clamped-gather reference)
    cols = lax.broadcasted_iota(jnp.int32, (n, thw), 1) + k * thw
    wmat = ((cols == a11).astype(jnp.float32) * bw11
            + (cols == a21).astype(jnp.float32) * bw21
            + (cols == a12).astype(jnp.float32) * bw12
            + (cols == a22).astype(jnp.float32) * bw22)

    # acc[c, q] += sum_p zf[c, p] * wmat[q, p]
    acc_ref[...] += lax.dot_general(
        zf_ref[...], wmat, (((1,), (1,)), ((), ())),
        preferred_element_type=jnp.float32)

    # ---- last H*W step: on-chip (C,N)->(N,C) row-major reshape + MLP head ---
    @pl.when(k == nk - 1)
    def _finalize():
        # flatten (C, N) row-major into a (1, C*N) lane vector
        flat = jnp.concatenate(
            [acc_ref[row:row + 1, :] for row in range(c)], axis=1)
        # re-split as (N, C): row i of Qxy = flat[i*C : (i+1)*C]
        for i in range(n):
            qxy_ref[i:i + 1, :] = flat[0:1, i * c:(i + 1) * c]
        qxy = qxy_ref[...]                     # (N, C)

        def lin(xv, w_r, b_r):
            return jnp.dot(xv, w_r[...],
                           preferred_element_type=jnp.float32) + b_r[...]

        # merged linear1/linear2: [Q | Qxy] @ [w1; w2] + (b1 + b2)
        s = lin(jnp.concatenate([q_ref[...], qxy], axis=1), w12_ref, b12_ref)
        # ResidualLayer: linear2(linear1(x) + x)
        s = lin(lin(s, wr1_ref, br1_ref) + s, wr2_ref, br2_ref)
        s = jnp.maximum(s, 0.0)                # relu
        q_delta = lin(s, w3_ref, b3_ref)       # (N, K*2), K = 2

        q_xy = q_ref[:, 0:2]                   # (N, 2)
        # q_xy.repeat(1, 2, 1) + q_delta, flattened over the last two dims
        r_ref[...] = jnp.concatenate([q_xy, q_xy], axis=1) + q_delta


# ----------------------------------------------------------------------------
# Wrapper
# ----------------------------------------------------------------------------
def offset_prediction_forward(Z, Q, params, *, K=2, thw_max=2048):
    c, h, wdt = Z.shape
    n = Q.shape[0]
    hw = h * wdt
    zf = Z.reshape(c, hw).astype(jnp.float32)

    # (8,128)-aligned H*W tile, padded spatial axis (padding never matches a
    # valid corner address, so it contributes exactly zero).
    thw = min(((hw + 127) // 128) * 128, thw_max)
    hwp = ((hw + thw - 1) // thw) * thw
    if hwp != hw:
        zf = jnp.pad(zf, ((0, 0), (0, hwp - hw)))
    num_k = hwp // thw

    hidden = params["w1"].shape[1]
    # merge linear1 / linear2: one matmul in-kernel
    w12 = jnp.concatenate([params["w1"], params["w2"]], axis=0)   # (3+C, hidden)
    b12 = params["b1"] + params["b2"]

    kernel = functools.partial(_fused_kernel, height=h, width=wdt,
                               thw=thw, n=n, c=c)

    grid_spec = pltpu.PrefetchScalarGridSpec(
        num_scalar_prefetch=0,
        grid=(num_k,),
        in_specs=[
            pl.BlockSpec((n, 3), lambda k: (0, 0)),            # Q (resident)
            pl.BlockSpec((c, thw), lambda k: (0, k)),          # zf, H*W tiled
            pl.BlockSpec((3 + c, hidden), lambda k: (0, 0)),   # merged w1;w2
            pl.BlockSpec((1, hidden), lambda k: (0, 0)),       # merged bias
            pl.BlockSpec((hidden, hidden), lambda k: (0, 0)),  # wr1
            pl.BlockSpec((1, hidden), lambda k: (0, 0)),       # br1
            pl.BlockSpec((hidden, hidden), lambda k: (0, 0)),  # wr2
            pl.BlockSpec((1, hidden), lambda k: (0, 0)),       # br2
            pl.BlockSpec((hidden, K * 2), lambda k: (0, 0)),   # w3
            pl.BlockSpec((1, K * 2), lambda k: (0, 0)),        # b3
        ],
        out_specs=(
            pl.BlockSpec((n, c), lambda k: (0, 0)),            # Qxy
            pl.BlockSpec((n, K * 2), lambda k: (0, 0)),        # r (flat)
        ),
        scratch_shapes=[
            pltpu.VMEM((c, n), jnp.float32),                   # interp accum
        ],
    )

    qxy, r_flat = pl.pallas_call(
        kernel,
        grid_spec=grid_spec,
        out_shape=(jax.ShapeDtypeStruct((n, c), jnp.float32),
                   jax.ShapeDtypeStruct((n, K * 2), jnp.float32)),
        compiler_params=pltpu.CompilerParams(
            dimension_semantics=("arbitrary",),
            vmem_limit_bytes=32 * 1024 * 1024),
        cost_estimate=pl.CostEstimate(
            flops=2 * c * n * hwp
                  + 2 * n * hidden * (3 + c + 2 * hidden + K * 2),
            transcendentals=0,
            bytes_accessed=4 * (c * hwp + n * (3 + 2 * c + 2 * K * 2))),
    )(Q.astype(jnp.float32), zf, w12, b12,
      params["wr1"], params["br1"], params["wr2"], params["br2"],
      params["w3"], params["b3"])

    return qxy, r_flat.reshape(n, K, 2)


# ----------------------------------------------------------------------------
# Deterministic parameter init (weights stored as (in, out), bias as (1, out))
# ----------------------------------------------------------------------------
def init_params(key, in_channel, hidden, K):
    ks = jax.random.split(key, 5)

    def lin_params(k, fan_in, fan_out):
        kw, kb = jax.random.split(k)
        bound = 1.0 / jnp.sqrt(jnp.float32(fan_in))
        w = jax.random.uniform(kw, (fan_in, fan_out), jnp.float32, -bound, bound)
        b = jax.random.uniform(kb, (1, fan_out), jnp.float32, -bound, bound)
        return w, b

    w1, b1 = lin_params(ks[0], 3, hidden)
    w2, b2 = lin_params(ks[1], in_channel, hidden)
    wr1, br1 = lin_params(ks[2], hidden, hidden)
    wr2, br2 = lin_params(ks[3], hidden, hidden)
    w3, b3 = lin_params(ks[4], hidden, K * 2)
    return dict(w1=w1, b1=b1, w2=w2, b2=b2, wr1=wr1, br1=br1,
                wr2=wr2, br2=br2, w3=w3, b3=b3)


# ----------------------------------------------------------------------------
# Pure-JAX reference of the PyTorch forward (for correctness checking)
# ----------------------------------------------------------------------------
def reference_forward(Z, Q, params, *, K=2):
    c, h, w = Z.shape
    x = Q[:, 0]
    y = Q[:, 1]
    x1 = x.astype(jnp.int32)
    y1 = y.astype(jnp.int32)
    x2 = x1 + 1
    y2 = y1 + 1
    x1 = jnp.clip(x1, 0, h - 1)
    y1 = jnp.clip(y1, 0, w - 1)
    x2 = jnp.clip(x2, 0, h - 1)
    y2 = jnp.clip(y2, 0, w - 1)
    Q11 = Z[:, x1, y1]
    Q12 = Z[:, x1, y2]
    Q21 = Z[:, x2, y1]
    Q22 = Z[:, x2, y2]
    dx = x - x1
    dy = y - y1
    R1 = Q11 * (1 - dx) + Q21 * dx
    R2 = Q12 * (1 - dx) + Q22 * dx
    interp = R1 * (1 - dy) + R2 * dy
    Qxy = interp.reshape(-1, c)   # row-major re-interpretation, same as torch

    lin = lambda a, wgt, b: a @ wgt + b
    q = lin(Q, params["w1"], params["b1"])
    q_z = lin(Qxy, params["w2"], params["b2"])
    s = q_z + q
    s = lin(lin(s, params["wr1"], params["br1"]) + s, params["wr2"], params["br2"])
    s = jnp.maximum(s, 0.0)
    q_delta = lin(s, params["w3"], params["b3"]).reshape(-1, K, 2)
    q_xy = jnp.tile(Q[:, None, 0:2], (1, 2, 1))
    r = q_xy + q_delta
    return Qxy, r


if __name__ == "__main__":
    C, H, W_SP, N, HID, K = 4, 16, 16, 8, 16, 2

    key = jax.random.PRNGKey(0)
    kz, kq, ke, kp = jax.random.split(key, 4)

    Z = jax.random.normal(kz, (C, H, W_SP), jnp.float32)
    xy = jax.random.uniform(kq, (N, 2), jnp.float32, 0.0, float(H - 1))
    extra = jax.random.normal(ke, (N, 1), jnp.float32)
    Q = jnp.concatenate([xy, extra], axis=1)            # (N, 3)

    params = init_params(kp, C, HID, K)

    # thw_max=128 -> 2 grid steps at H*W=256, exercising the accumulate path.
    Qxy, r = offset_prediction_forward(Z, Q, params, K=K, thw_max=128)
    jax.block_until_ready((Qxy, r))

    Qxy_ref, r_ref = reference_forward(Z, Q, params, K=K)
    assert Qxy.shape == (N, C) and r.shape == (N, K, 2)
    assert jnp.allclose(Qxy, Qxy_ref, atol=1e-3, rtol=1e-3)
    assert jnp.allclose(r, r_ref, atol=1e-2, rtol=1e-2)

    print("KERNEL_OK")
</pallas_src>

<mosaic_0001>
module attributes {stable_mosaic.version = 11 : i64} {
  func.func @_fused_kernel(%arg0: i32, %arg1: memref<8x3xf32, #tpu.memory_space<vmem>>, %arg2: memref<4x128xf32, #tpu.memory_space<vmem>>, %arg3: memref<7x16xf32, #tpu.memory_space<vmem>>, %arg4: memref<1x16xf32, #tpu.memory_space<vmem>>, %arg5: memref<16x16xf32, #tpu.memory_space<vmem>>, %arg6: memref<1x16xf32, #tpu.memory_space<vmem>>, %arg7: memref<16x16xf32, #tpu.memory_space<vmem>>, %arg8: memref<1x16xf32, #tpu.memory_space<vmem>>, %arg9: memref<16x4xf32, #tpu.memory_space<vmem>>, %arg10: memref<1x4xf32, #tpu.memory_space<vmem>>, %arg11: memref<8x4xf32, #tpu.memory_space<vmem>>, %arg12: memref<8x4xf32, #tpu.memory_space<vmem>>, %arg13: memref<4x8xf32, #tpu.memory_space<vmem>>) attributes {dimension_semantics = [#tpu.dimension_semantics<arbitrary>], iteration_bounds = array<i64: 2>, scalar_prefetch = 0 : i64, scratch_operands = 1 : i64, tpu.core_type = #tpu.core_type<tc>, window_params = [{pipeline_mode = #tpu.pipeline_mode<synchronous>, transform_indices = @transform_0, window_bounds = array<i64: 8, 3>}, {transform_indices = @transform_1, window_bounds = array<i64: 4, 128>}, {pipeline_mode = #tpu.pipeline_mode<synchronous>, transform_indices = @transform_2, window_bounds = array<i64: 7, 16>}, {pipeline_mode = #tpu.pipeline_mode<synchronous>, transform_indices = @transform_3, window_bounds = array<i64: 1, 16>}, {pipeline_mode = #tpu.pipeline_mode<synchronous>, transform_indices = @transform_4, window_bounds = array<i64: 16, 16>}, {pipeline_mode = #tpu.pipeline_mode<synchronous>, transform_indices = @transform_5, window_bounds = array<i64: 1, 16>}, {pipeline_mode = #tpu.pipeline_mode<synchronous>, transform_indices = @transform_6, window_bounds = array<i64: 16, 16>}, {pipeline_mode = #tpu.pipeline_mode<synchronous>, transform_indices = @transform_7, window_bounds = array<i64: 1, 16>}, {pipeline_mode = #tpu.pipeline_mode<synchronous>, transform_indices = @transform_8, window_bounds = array<i64: 16, 4>}, {pipeline_mode = #tpu.pipeline_mode<synchronous>, transform_indices = @transform_9, window_bounds = array<i64: 1, 4>}, {pipeline_mode = #tpu.pipeline_mode<synchronous>, transform_indices = @transform_10, window_bounds = array<i64: 8, 4>}, {pipeline_mode = #tpu.pipeline_mode<synchronous>, transform_indices = @transform_11, window_bounds = array<i64: 8, 4>}]} {
    %c0_i32 = arith.constant 0 : i32
    %0 = arith.cmpi eq, %arg0, %c0_i32 : i32
    %1 = arith.extui %0 : i1 to i32
    %c0_i32_0 = arith.constant 0 : i32
    %2 = arith.cmpi ne, %1, %c0_i32_0 : i32
    scf.if %2 {
      %cst_26 = arith.constant 0.000000e+00 : f32
      %94 = vector.broadcast %cst_26 : f32 to vector<4x8xf32>
      %c0_27 = arith.constant 0 : index
      %c0_28 = arith.constant 0 : index
      %95 = vector.load %arg13[%c0_27, %c0_28] : memref<4x8xf32, #tpu.memory_space<vmem>>, vector<4x8xf32>
      tpu.vector_store %arg13[%c0_27, %c0_28], %94 {strides = array<i32>} : memref<4x8xf32, #tpu.memory_space<vmem>>, vector<4x8xf32>,
    } else {
    }
    %c0 = arith.constant 0 : index
    %c0_1 = arith.constant 0 : index
    %3 = vector.load %arg1[%c0, %c0_1] : memref<8x3xf32, #tpu.memory_space<vmem>>, vector<8x1xf32>
    %c0_2 = arith.constant 0 : index
    %c1 = arith.constant 1 : index
    %4 = vector.load %arg1[%c0_2, %c1] : memref<8x3xf32, #tpu.memory_space<vmem>>, vector<8x1xf32>
    %5 = arith.fptosi %3 : vector<8x1xf32> to vector<8x1xi32>
    %6 = arith.fptosi %4 : vector<8x1xf32> to vector<8x1xi32>
    %c1_i32 = arith.constant 1 : i32
    %7 = vector.broadcast %c1_i32 : i32 to vector<8x1xi32>
    %8 = arith.addi %5, %7 : vector<8x1xi32>
    %c1_i32_3 = arith.constant 1 : i32
    %9 = vector.broadcast %c1_i32_3 : i32 to vector<8x1xi32>
    %10 = arith.addi %6, %9 : vector<8x1xi32>
    %c0_i32_4 = arith.constant 0 : i32
    %c15_i32 = arith.constant 15 : i32
    %11 = vector.broadcast %c0_i32_4 : i32 to vector<8x1xi32>
    %12 = arith.maxsi %11, %5 : vector<8x1xi32>
    %13 = vector.broadcast %c15_i32 : i32 to vector<8x1xi32>
    %14 = arith.minsi %13, %12 : vector<8x1xi32>
    %c0_i32_5 = arith.constant 0 : i32
    %c15_i32_6 = arith.constant 15 : i32
    %15 = vector.broadcast %c0_i32_5 : i32 to vector<8x1xi32>
    %16 = arith.maxsi %15, %6 : vector<8x1xi32>
    %17 = vector.broadcast %c15_i32_6 : i32 to vector<8x1xi32>
    %18 = arith.minsi %17, %16 : vector<8x1xi32>
    %c0_i32_7 = arith.constant 0 : i32
    %c15_i32_8 = arith.constant 15 : i32
    %19 = vector.broadcast %c0_i32_7 : i32 to vector<8x1xi32>
    %20 = arith.maxsi %19, %8 : vector<8x1xi32>
    %21 = vector.broadcast %c15_i32_8 : i32 to vector<8x1xi32>
    %22 = arith.minsi %21, %20 : vector<8x1xi32>
    %c0_i32_9 = arith.constant 0 : i32
    %c15_i32_10 = arith.constant 15 : i32
    %23 = vector.broadcast %c0_i32_9 : i32 to vector<8x1xi32>
    %24 = arith.maxsi %23, %10 : vector<8x1xi32>
    %25 = vector.broadcast %c15_i32_10 : i32 to vector<8x1xi32>
    %26 = arith.minsi %25, %24 : vector<8x1xi32>
    %27 = arith.sitofp %14 : vector<8x1xi32> to vector<8x1xf32>
    %28 = arith.subf %3, %27 : vector<8x1xf32>
    %29 = arith.sitofp %18 : vector<8x1xi32> to vector<8x1xf32>
    %30 = arith.subf %4, %29 : vector<8x1xf32>
    %cst = arith.constant 1.000000e+00 : f32
    %31 = vector.broadcast %cst : f32 to vector<8x1xf32>
    %32 = arith.subf %31, %28 : vector<8x1xf32>
    %cst_11 = arith.constant 1.000000e+00 : f32
    %33 = vector.broadcast %cst_11 : f32 to vector<8x1xf32>
    %34 = arith.subf %33, %30 : vector<8x1xf32>
    %35 = arith.mulf %32, %34 : vector<8x1xf32>
    %cst_12 = arith.constant 1.000000e+00 : f32
    %36 = vector.broadcast %cst_12 : f32 to vector<8x1xf32>
    %37 = arith.subf %36, %30 : vector<8x1xf32>
    %38 = arith.mulf %28, %37 : vector<8x1xf32>
    %cst_13 = arith.constant 1.000000e+00 : f32
    %39 = vector.broadcast %cst_13 : f32 to vector<8x1xf32>
    %40 = arith.subf %39, %28 : vector<8x1xf32>
    %41 = arith.mulf %40, %30 : vector<8x1xf32>
    %42 = arith.mulf %28, %30 : vector<8x1xf32>
    %c16_i32 = arith.constant 16 : i32
    %43 = vector.broadcast %c16_i32 : i32 to vector<8x1xi32>
    %44 = arith.muli %14, %43 : vector<8x1xi32>
    %45 = arith.addi %44, %18 : vector<8x1xi32>
    %c16_i32_14 = arith.constant 16 : i32
    %46 = vector.broadcast %c16_i32_14 : i32 to vector<8x1xi32>
    %47 = arith.muli %22, %46 : vector<8x1xi32>
    %48 = arith.addi %47, %18 : vector<8x1xi32>
    %c16_i32_15 = arith.constant 16 : i32
    %49 = vector.broadcast %c16_i32_15 : i32 to vector<8x1xi32>
    %50 = arith.muli %14, %49 : vector<8x1xi32>
    %51 = arith.addi %50, %26 : vector<8x1xi32>
    %c16_i32_16 = arith.constant 16 : i32
    %52 = vector.broadcast %c16_i32_16 : i32 to vector<8x1xi32>
    %53 = arith.muli %22, %52 : vector<8x1xi32>
    %54 = arith.addi %53, %26 : vector<8x1xi32>
    %55 = tpu.iota {dimensions = array<i32: 1>} : vector<8x128xi32>
    %c128_i32 = arith.constant 128 : i32
    %56 = arith.muli %arg0, %c128_i32 : i32
    %57 = vector.broadcast %56 : i32 to vector<8x128xi32>
    %58 = arith.addi %55, %57 : vector<8x128xi32>
    %59 = vector.broadcast %45 : vector<8x1xi32> to vector<8x128xi32>
    %60 = arith.cmpi eq, %58, %59 : vector<8x128xi32>
    %61 = arith.extui %60 : vector<8x128xi1> to vector<8x128xi32>
    %62 = arith.sitofp %61 : vector<8x128xi32> to vector<8x128xf32>
    %63 = vector.broadcast %35 : vector<8x1xf32> to vector<8x128xf32>
    %64 = arith.mulf %62, %63 : vector<8x128xf32>
    %65 = vector.broadcast %48 : vector<8x1xi32> to vector<8x128xi32>
    %66 = arith.cmpi eq, %58, %65 : vector<8x128xi32>
    %67 = arith.extui %66 : vector<8x128xi1> to vector<8x128xi32>
    %68 = arith.sitofp %67 : vector<8x128xi32> to vector<8x128xf32>
    %69 = vector.broadcast %38 : vector<8x1xf32> to vector<8x128xf32>
    %70 = arith.mulf %68, %69 : vector<8x128xf32>
    %71 = arith.addf %64, %70 : vector<8x128xf32>
    %72 = vector.broadcast %51 : vector<8x1xi32> to vector<8x128xi32>
    %73 = arith.cmpi eq, %58, %72 : vector<8x128xi32>
    %74 = arith.extui %73 : vector<8x128xi1> to vector<8x128xi32>
    %75 = arith.sitofp %74 : vector<8x128xi32> to vector<8x128xf32>
    %76 = vector.broadcast %41 : vector<8x1xf32> to vector<8x128xf32>
    %77 = arith.mulf %75, %76 : vector<8x128xf32>
    %78 = arith.addf %71, %77 : vector<8x128xf32>
    %79 = vector.broadcast %54 : vector<8x1xi32> to vector<8x128xi32>
    %80 = arith.cmpi eq, %58, %79 : vector<8x128xi32>
    %81 = arith.extui %80 : vector<8x128xi1> to vector<8x128xi32>
    %82 = arith.sitofp %81 : vector<8x128xi32> to vector<8x128xf32>
    %83 = vector.broadcast %42 : vector<8x1xf32> to vector<8x128xf32>
    %84 = arith.mulf %82, %83 : vector<8x128xf32>
    %85 = arith.addf %78, %84 : vector<8x128xf32>
    %c0_17 = arith.constant 0 : index
    %c0_18 = arith.constant 0 : index
    %86 = vector.load %arg13[%c0_17, %c0_18] : memref<4x8xf32, #tpu.memory_space<vmem>>, vector<4x8xf32>
    %c0_19 = arith.constant 0 : index
    %c0_20 = arith.constant 0 : index
    %87 = vector.load %arg2[%c0_19, %c0_20] : memref<4x128xf32, #tpu.memory_space<vmem>>, vector<4x128xf32>
    %cst_21 = arith.constant dense<0.000000e+00> : vector<4x8xf32>
    %88 = tpu.matmul %87, %85, %cst_21 {dimension_numbers = #tpu.dot_dimension_numbers<[1], [1], [0], [0], [0, 0, 1, 0], [], []>} : vector<4x128xf32>, vector<8x128xf32>, vector<4x8xf32> -> vector<4x8xf32>
    %89 = arith.addf %86, %88 : vector<4x8xf32>
    %c0_22 = arith.constant 0 : index
    %c0_23 = arith.constant 0 : index
    %90 = vector.load %arg13[%c0_22, %c0_23] : memref<4x8xf32, #tpu.memory_space<vmem>>, vector<4x8xf32>
    tpu.vector_store %arg13[%c0_22, %c0_23], %89 {strides = array<i32>} : memref<4x8xf32, #tpu.memory_space<vmem>>, vector<4x8xf32>,
    %c1_i32_24 = arith.constant 1 : i32
    %91 = arith.cmpi eq, %arg0, %c1_i32_24 : i32
    %92 = arith.extui %91 : i1 to i32
    %c0_i32_25 = arith.constant 0 : i32
    %93 = arith.cmpi ne, %92, %c0_i32_25 : i32
    scf.if %93 {
      %c0_26 = arith.constant 0 : index
      %c0_27 = arith.constant 0 : index
      %94 = vector.load %arg13[%c0_26, %c0_27] : memref<4x8xf32, #tpu.memory_space<vmem>>, vector<1x8xf32>
      %c1_28 = arith.constant 1 : index
      %c0_29 = arith.constant 0 : index
      %95 = vector.load %arg13[%c1_28, %c0_29] : memref<4x8xf32, #tpu.memory_space<vmem>>, vector<1x8xf32>
      %c2 = arith.constant 2 : index
      %c0_30 = arith.constant 0 : index
      %96 = vector.load %arg13[%c2, %c0_30] : memref<4x8xf32, #tpu.memory_space<vmem>>, vector<1x8xf32>
      %c3 = arith.constant 3 : index
      %c0_31 = arith.constant 0 : index
      %97 = vector.load %arg13[%c3, %c0_31] : memref<4x8xf32, #tpu.memory_space<vmem>>, vector<1x8xf32>
      %98 = tpu.concatenate %94, %95, %96, %97 in 1 : vector<1x8xf32>, vector<1x8xf32>, vector<1x8xf32>, vector<1x8xf32> -> vector<1x32xf32>
      %99 = vector.extract_strided_slice %98 {offsets = [0, 0], sizes = [1, 4], strides = [1, 1]} : vector<1x32xf32> to vector<1x4xf32>
      %c0_32 = arith.constant 0 : index
      %c0_33 = arith.constant 0 : index
      %100 = vector.load %arg11[%c0_32, %c0_33] : memref<8x4xf32, #tpu.memory_space<vmem>>, vector<1x4xf32>
      tpu.vector_store %arg11[%c0_32, %c0_33], %99 {strides = array<i32>} : memref<8x4xf32, #tpu.memory_space<vmem>>, vector<1x4xf32>,
      %101 = vector.extract_strided_slice %98 {offsets = [0, 4], sizes = [1, 4], strides = [1, 1]} : vector<1x32xf32> to vector<1x4xf32>
      %c1_34 = arith.constant 1 : index
      %c0_35 = arith.constant 0 : index
      %102 = vector.load %arg11[%c1_34, %c0_35] : memref<8x4xf32, #tpu.memory_space<vmem>>, vector<1x4xf32>
      tpu.vector_store %arg11[%c1_34, %c0_35], %101 {strides = array<i32>} : memref<8x4xf32, #tpu.memory_space<vmem>>, vector<1x4xf32>,
      %103 = vector.extract_strided_slice %98 {offsets = [0, 8], sizes = [1, 4], strides = [1, 1]} : vector<1x32xf32> to vector<1x4xf32>
      %c2_36 = arith.constant 2 : index
      %c0_37 = arith.constant 0 : index
      %104 = vector.load %arg11[%c2_36, %c0_37] : memref<8x4xf32, #tpu.memory_space<vmem>>, vector<1x4xf32>
      tpu.vector_store %arg11[%c2_36, %c0_37], %103 {strides = array<i32>} : memref<8x4xf32, #tpu.memory_space<vmem>>, vector<1x4xf32>,
      %105 = vector.extract_strided_slice %98 {offsets = [0, 12], sizes = [1, 4], strides = [1, 1]} : vector<1x32xf32> to vector<1x4xf32>
      %c3_38 = arith.constant 3 : index
      %c0_39 = arith.constant 0 : index
      %106 = vector.load %arg11[%c3_38, %c0_39] : memref<8x4xf32, #tpu.memory_space<vmem>>, vector<1x4xf32>
      tpu.vector_store %arg11[%c3_38, %c0_39], %105 {strides = array<i32>} : memref<8x4xf32, #tpu.memory_space<vmem>>, vector<1x4xf32>,
      %107 = vector.extract_strided_slice %98 {offsets = [0, 16], sizes = [1, 4], strides = [1, 1]} : vector<1x32xf32> to vector<1x4xf32>
      %c4 = arith.constant 4 : index
      %c0_40 = arith.constant 0 : index
      %108 = vector.load %arg11[%c4, %c0_40] : memref<8x4xf32, #tpu.memory_space<vmem>>, vector<1x4xf32>
      tpu.vector_store %arg11[%c4, %c0_40], %107 {strides = array<i32>} : memref<8x4xf32, #tpu.memory_space<vmem>>, vector<1x4xf32>,
      %109 = vector.extract_strided_slice %98 {offsets = [0, 20], sizes = [1, 4], strides = [1, 1]} : vector<1x32xf32> to vector<1x4xf32>
      %c5 = arith.constant 5 : index
      %c0_41 = arith.constant 0 : index
      %110 = vector.load %arg11[%c5, %c0_41] : memref<8x4xf32, #tpu.memory_space<vmem>>, vector<1x4xf32>
      tpu.vector_store %arg11[%c5, %c0_41], %109 {strides = array<i32>} : memref<8x4xf32, #tpu.memory_space<vmem>>, vector<1x4xf32>,
      %111 = vector.extract_strided_slice %98 {offsets = [0, 24], sizes = [1, 4], strides = [1, 1]} : vector<1x32xf32> to vector<1x4xf32>
      %c6 = arith.constant 6 : index
      %c0_42 = arith.constant 0 : index
      %112 = vector.load %arg11[%c6, %c0_42] : memref<8x4xf32, #tpu.memory_space<vmem>>, vector<1x4xf32>
      tpu.vector_store %arg11[%c6, %c0_42], %111 {strides = array<i32>} : memref<8x4xf32, #tpu.memory_space<vmem>>, vector<1x4xf32>,
      %113 = vector.extract_strided_slice %98 {offsets = [0, 28], sizes = [1, 4], strides = [1, 1]} : vector<1x32xf32> to vector<1x4xf32>
      %c7 = arith.constant 7 : index
      %c0_43 = arith.constant 0 : index
      %114 = vector.load %arg11[%c7, %c0_43] : memref<8x4xf32, #tpu.memory_space<vmem>>, vector<1x4xf32>
      tpu.vector_store %arg11[%c7, %c0_43], %113 {strides = array<i32>} : memref<8x4xf32, #tpu.memory_space<vmem>>, vector<1x4xf32>,
      %c0_44 = arith.constant 0 : index
      %c0_45 = arith.constant 0 : index
      %115 = vector.load %arg11[%c0_44, %c0_45] : memref<8x4xf32, #tpu.memory_space<vmem>>, vector<8x4xf32>
      %c0_46 = arith.constant 0 : index
      %c0_47 = arith.constant 0 : index
      %116 = vector.load %arg1[%c0_46, %c0_47] : memref<8x3xf32, #tpu.memory_space<vmem>>, vector<8x3xf32>
      %117 = tpu.concatenate %116, %115 in 1 : vector<8x3xf32>, vector<8x4xf32> -> vector<8x7xf32>
      %c0_48 = arith.constant 0 : index
      %c0_49 = arith.constant 0 : index
      %118 = vector.load %arg3[%c0_48, %c0_49] : memref<7x16xf32, #tpu.memory_space<vmem>>, vector<7x16xf32>
      %cst_50 = arith.constant dense<0.000000e+00> : vector<8x16xf32>
      %119 = tpu.matmul %117, %118, %cst_50 {dimension_numbers = #tpu.dot_dimension_numbers<[1], [0], [0], [1], [0, 0, 1, 1], [], []>} : vector<8x7xf32>, vector<7x16xf32>, vector<8x16xf32> -> vector<8x16xf32>
      %c0_51 = arith.constant 0 : index
      %c0_52 = arith.constant 0 : index
      %120 = vector.load %arg4[%c0_51, %c0_52] : memref<1x16xf32, #tpu.memory_space<vmem>>, vector<1x16xf32>
      %121 = vector.broadcast %120 : vector<1x16xf32> to vector<8x16xf32>
      %122 = arith.addf %119, %121 : vector<8x16xf32>
      %c0_53 = arith.constant 0 : index
      %c0_54 = arith.constant 0 : index
      %123 = vector.load %arg5[%c0_53, %c0_54] : memref<16x16xf32, #tpu.memory_space<vmem>>, vector<16x16xf32>
      %cst_55 = arith.constant dense<0.000000e+00> : vector<8x16xf32>
      %124 = tpu.matmul %122, %123, %cst_55 {dimension_numbers = #tpu.dot_dimension_numbers<[1], [0], [0], [1], [0, 0, 1, 1], [], []>} : vector<8x16xf32>, vector<16x16xf32>, vector<8x16xf32> -> vector<8x16xf32>
      %c0_56 = arith.constant 0 : index
      %c0_57 = arith.constant 0 : index
      %125 = vector.load %arg6[%c0_56, %c0_57] : memref<1x16xf32, #tpu.memory_space<vmem>>, vector<1x16xf32>
      %126 = vector.broadcast %125 : vector<1x16xf32> to vector<8x16xf32>
      %127 = arith.addf %124, %126 : vector<8x16xf32>
      %128 = arith.addf %127, %122 : vector<8x16xf32>
      %c0_58 = arith.constant 0 : index
      %c0_59 = arith.constant 0 : index
      %129 = vector.load %arg7[%c0_58, %c0_59] : memref<16x16xf32, #tpu.memory_space<vmem>>, vector<16x16xf32>
      %cst_60 = arith.constant dense<0.000000e+00> : vector<8x16xf32>
      %130 = tpu.matmul %128, %129, %cst_60 {dimension_numbers = #tpu.dot_dimension_numbers<[1], [0], [0], [1], [0, 0, 1, 1], [], []>} : vector<8x16xf32>, vector<16x16xf32>, vector<8x16xf32> -> vector<8x16xf32>
      %c0_61 = arith.constant 0 : index
      %c0_62 = arith.constant 0 : index
      %131 = vector.load %arg8[%c0_61, %c0_62] : memref<1x16xf32, #tpu.memory_space<vmem>>, vector<1x16xf32>
      %132 = vector.broadcast %131 : vector<1x16xf32> to vector<8x16xf32>
      %133 = arith.addf %130, %132 : vector<8x16xf32>
      %cst_63 = arith.constant 0.000000e+00 : f32
      %134 = vector.broadcast %cst_63 : f32 to vector<8x16xf32>
      %135 = arith.maximumf %133, %134 : vector<8x16xf32>
      %c0_64 = arith.constant 0 : index
      %c0_65 = arith.constant 0 : index
      %136 = vector.load %arg9[%c0_64, %c0_65] : memref<16x4xf32, #tpu.memory_space<vmem>>, vector<16x4xf32>
      %cst_66 = arith.constant dense<0.000000e+00> : vector<8x4xf32>
      %137 = tpu.matmul %135, %136, %cst_66 {dimension_numbers = #tpu.dot_dimension_numbers<[1], [0], [0], [1], [0, 0, 1, 1], [], []>} : vector<8x16xf32>, vector<16x4xf32>, vector<8x4xf32> -> vector<8x4xf32>
      %c0_67 = arith.constant 0 : index
      %c0_68 = arith.constant 0 : index
      %138 = vector.load %arg10[%c0_67, %c0_68] : memref<1x4xf32, #tpu.memory_space<vmem>>, vector<1x4xf32>
      %139 = vector.broadcast %138 : vector<1x4xf32> to vector<8x4xf32>
      %140 = arith.addf %137, %139 : vector<8x4xf32>
      %c0_69 = arith.constant 0 : index
      %c0_70 = arith.constant 0 : index
      %141 = vector.load %arg1[%c0_69, %c0_70] : memref<8x3xf32, #tpu.memory_space<vmem>>, vector<8x2xf32>
      %142 = tpu.concatenate %141, %141 in 1 : vector<8x2xf32>, vector<8x2xf32> -> vector<8x4xf32>
      %143 = arith.addf %142, %140 : vector<8x4xf32>
      %c0_71 = arith.constant 0 : index
      %c0_72 = arith.constant 0 : index
      %144 = vector.load %arg12[%c0_71, %c0_72] : memref<8x4xf32, #tpu.memory_space<vmem>>, vector<8x4xf32>
      tpu.vector_store %arg12[%c0_71, %c0_72], %143 {strides = array<i32>} : memref<8x4xf32, #tpu.memory_space<vmem>>, vector<8x4xf32>,
    } else {
    }
    return
  }
  func.func @transform_0(%arg0: i32) -> (i32, i32) {
    %c0_i32 = arith.constant 0 : i32
    %c0_i32_0 = arith.constant 0 : i32
    %c0_i32_1 = arith.constant 0 : i32
    return %c0_i32, %c0_i32_0 : i32, i32
  }
  func.func @transform_1(%arg0: i32) -> (i32, i32) {
    %c0_i32 = arith.constant 0 : i32
    %c0_i32_0 = arith.constant 0 : i32
    return %c0_i32, %arg0 : i32, i32
  }
  func.func @transform_2(%arg0: i32) -> (i32, i32) {
    %c0_i32 = arith.constant 0 : i32
    %c0_i32_0 = arith.constant 0 : i32
    %c0_i32_1 = arith.constant 0 : i32
    return %c0_i32, %c0_i32_0 : i32, i32
  }
  func.func @transform_3(%arg0: i32) -> (i32, i32) {
    %c0_i32 = arith.constant 0 : i32
    %c0_i32_0 = arith.constant 0 : i32
    %c0_i32_1 = arith.constant 0 : i32
    return %c0_i32, %c0_i32_0 : i32, i32
  }
  func.func @transform_4(%arg0: i32) -> (i32, i32) {
    %c0_i32 = arith.constant 0 : i32
    %c0_i32_0 = arith.constant 0 : i32
    %c0_i32_1 = arith.constant 0 : i32
    return %c0_i32, %c0_i32_0 : i32, i32
  }
  func.func @transform_5(%arg0: i32) -> (i32, i32) {
    %c0_i32 = arith.constant 0 : i32
    %c0_i32_0 = arith.constant 0 : i32
    %c0_i32_1 = arith.constant 0 : i32
    return %c0_i32, %c0_i32_0 : i32, i32
  }
  func.func @transform_6(%arg0: i32) -> (i32, i32) {
    %c0_i32 = arith.constant 0 : i32
    %c0_i32_0 = arith.constant 0 : i32
    %c0_i32_1 = arith.constant 0 : i32
    return %c0_i32, %c0_i32_0 : i32, i32
  }
  func.func @transform_7(%arg0: i32) -> (i32, i32) {
    %c0_i32 = arith.constant 0 : i32
    %c0_i32_0 = arith.constant 0 : i32
    %c0_i32_1 = arith.constant 0 : i32
    return %c0_i32, %c0_i32_0 : i32, i32
  }
  func.func @transform_8(%arg0: i32) -> (i32, i32) {
    %c0_i32 = arith.constant 0 : i32
    %c0_i32_0 = arith.constant 0 : i32
    %c0_i32_1 = arith.constant 0 : i32
    return %c0_i32, %c0_i32_0 : i32, i32
  }
  func.func @transform_9(%arg0: i32) -> (i32, i32) {
    %c0_i32 = arith.constant 0 : i32
    %c0_i32_0 = arith.constant 0 : i32
    %c0_i32_1 = arith.constant 0 : i32
    return %c0_i32, %c0_i32_0 : i32, i32
  }
  func.func @transform_10(%arg0: i32) -> (i32, i32) {
    %c0_i32 = arith.constant 0 : i32
    %c0_i32_0 = arith.constant 0 : i32
    %c0_i32_1 = arith.constant 0 : i32
    return %c0_i32, %c0_i32_0 : i32, i32
  }
  func.func @transform_11(%arg0: i32) -> (i32, i32) {
    %c0_i32 = arith.constant 0 : i32
    %c0_i32_0 = arith.constant 0 : i32
    %c0_i32_1 = arith.constant 0 : i32
    return %c0_i32, %c0_i32_0 : i32, i32
  }
}

</mosaic_0001>

<llo_original>
// kernel: tpu_custom_call.1
$region0: #{tpu_custom_call.1}
  #allocation0 [shape = 'u32[]', space=smem, size = 0x4, offset = 0x4, fixed_abs, tag = 'smem constant byte address 0x4 - core index']
  #allocation1 [shape = 'u32[72,128]{1,0:T(1,128)}', space=vmem, size = 0x9000, scoped, tag = 'internal scratch']
  #allocation2 [shape = 'f32[4,8]{1,0:T(4,128)}', space=vmem, size = 0x800, scoped, tag = 'scratch operand']
  %s0 = inlined_call_operand.vmem [shape: f32[8,3], index: 0, kind: input, shape index: {}]
  %s1 = inlined_call_operand.hbm [shape: f32[4,256], index: 1, kind: input, shape index: {}]
  %s2 = inlined_call_operand.hbm [shape: f32[7,16], index: 2, kind: input, shape index: {}]
  %s3 = inlined_call_operand.hbm [shape: f32[1,16], index: 3, kind: input, shape index: {}]
  %s4 = inlined_call_operand.vmem [shape: f32[16,16], index: 4, kind: input, shape index: {}]
  %s5 = inlined_call_operand.hbm [shape: f32[1,16], index: 5, kind: input, shape index: {}]
  %s6 = inlined_call_operand.vmem [shape: f32[16,16], index: 6, kind: input, shape index: {}]
  %s7 = inlined_call_operand.vmem [shape: f32[1,16], index: 7, kind: input, shape index: {}]
  %s8 = inlined_call_operand.vmem [shape: f32[16,4], index: 8, kind: input, shape index: {}]
  %s9 = inlined_call_operand.vmem [shape: f32[1,4], index: 9, kind: input, shape index: {}]
  %s10 = inlined_call_operand.vmem [shape: f32[8,4], index: 10, kind: output, shape index: {0}]
  %s11 = inlined_call_operand.vmem [shape: f32[8,4], index: 11, kind: output, shape index: {1}]
  %12 = xla_tuple %s10, %s11
  %s13 = sld [smem:[#allocation0]]
  $region105: #{tpu_custom_call.1} parent=0
    _
  %s15 = ssub.s32 1, %s13
  %s16 = scalar_select 0, %s15, %s13
  $region1: #{tpu_custom_call.1} parent=0
    #allocation3 [shape = 'u8[4096]{0}', space=vmem, size = 0x1000, scoped, tag = 'input window, operand 1']
    #allocation4 [shape = 's32[2]{0}', space=sflag, size = 0x8, scoped, tag = 'scoped memory for tpu_custom_call.1']
    #allocation5 [shape = 'u8[4096]{0}', space=vmem, size = 0x1000, scoped, tag = 'input window, operand 2, single buffered']
    #allocation6 [shape = 's32[1]{0}', space=sflag, size = 0x4, scoped, tag = 'scoped memory for tpu_custom_call.1']
    #allocation7 [shape = 'u8[512]{0}', space=vmem, size = 0x400, scoped, tag = 'input window, operand 3, single buffered']
    #allocation8 [shape = 'u8[512]{0}', space=vmem, size = 0x400, scoped, tag = 'input window, operand 5, single buffered']
    #allocation9 [shape = 's32[1]{0}', space=sflag, size = 0x4, scoped, tag = 'scoped memory for tpu_custom_call.1']
    %17 = vsyncpa [#allocation4], 0
    %s18 = scalar_lea.sflag [#allocation4], 1
    %19 = vsyncpa %s18, 0
    %20 = vsyncpa [#allocation6], 0
    %21 = vsyncpa [#allocation9], 0
    loop: start=0, step=1, limit=4
    $region2: #{tpu_custom_call.1} parent=1 // loop_pre_header
      _
    $region3: #{tpu_custom_call.1} parent=1 // loop_header
      %s23 = sphi 0, %s27
      %p24 = scmp.ge.s32.totalorder %s23, 4
      %s31 = sphi 0, %s31
      %s33 = sphi 0, %s31
      %s34 = sphi 0, %s33
      %s48 = sphi 0, %s34
      %s54 = sphi 0, %s56
      %s57 = sphi 0, %s54
      %s58 = sphi 0, %s57
      %s74 = sphi 0, %s58
      %s78 = sphi 0, %s78
      %s80 = sphi 0, %s78
      %s81 = sphi 0, %s80
      %s95 = sphi 0, %s81
      %s99 = sphi 0, %s99
      %s101 = sphi 0, %s99
      %s102 = sphi 0, %s101
      %s116 = sphi 0, %s102
      %s120 = sphi 0, %s120
      %s122 = sphi 0, %s120
      %s123 = sphi 0, %s122
      %s137 = sphi 0, %s123
      %s141 = sphi 0, %s141
      %s143 = sphi 0, %s141
      %s144 = sphi 0, %s143
      %s158 = sphi 0, %s144
      %s162 = sphi 0, %s162
      %s164 = sphi 0, %s162
      %s165 = sphi 0, %s164
      %s179 = sphi 0, %s165
      %s183 = sphi 0, %s183
      %s185 = sphi 0, %s183
      %s186 = sphi 0, %s185
      %s200 = sphi 0, %s186
      %s204 = sphi 0, %s204
      %s206 = sphi 0, %s204
      %s207 = sphi 0, %s206
      %s221 = sphi 0, %s207
      %s225 = sphi 0, %s225
      %s227 = sphi 0, %s225
      %s228 = sphi 0, %s227
      %s242 = sphi 0, %s228
      %s246 = sphi 0, %s246
      %s248 = sphi 0, %s246
      %s249 = sphi 0, %s248
      %s263 = sphi 0, %s249
      %s267 = sphi 0, %s267
      %s269 = sphi 0, %s267
      %s270 = sphi 0, %s269
      %s284 = sphi 0, %s270
    $region4: #{tpu_custom_call.1} parent=1 // loop_header_branch
      %26 = sbr.rel (%p24) target = $region8
    $region5: #{tpu_custom_call.1} parent=1 // loop_body
      %s28 = ssub.s32 %s23, 1
      %s29 = ssub.s32 %s23, 2
      %s30 = sadd.s32 %s23, 1
      %s32 = sadd.s32 %s31, 1
      %p35 = scmp.eq.s32.totalorder %s23, 1
      %p36 = scmp.ne.s32.totalorder %s31, %s33
      %p37 = scmp.eq.s32.totalorder %s23, 0
      %p38 = por %p36, %p37
      %p39 = scmp.ne.s32.totalorder %s31, %s33
      %p40 = scmp.eq.s32.totalorder %s28, 1
      %p41 = por %p39, %p40
      %p42 = scmp.ne.s32.totalorder %s33, %s34
      %p43 = scmp.eq.s32.totalorder %s28, 0
      %p44 = por %p42, %p43
      %p45 = scmp.ne.s32.totalorder %s33, %s34
      %p46 = scmp.eq.s32.totalorder %s29, 1
      %p47 = por %p45, %p46
      %p49 = scmp.ne.s32.totalorder %s34, %s48
      %p50 = scmp.eq.s32.totalorder %s29, 0
      %p51 = por %p49, %p50
      %s52 = ssub.s32 %s23, %s30
      %p53 = scmp.eq.s32.totalorder %s52, 0
      %s55 = sadd.s32 %s54, 1
      %s56 = scalar_select %p53, %s54, %s55
      %p59 = pneg %p53
      %p60 = scmp.eq.s32.totalorder %s23, 1
      %p61 = por %p59, %p60
      %p62 = scmp.ne.s32.totalorder %s54, %s57
      %p63 = scmp.eq.s32.totalorder %s23, 0
      %p64 = por %p62, %p63
      %p65 = scmp.ne.s32.totalorder %s54, %s57
      %p66 = scmp.eq.s32.totalorder %s28, 1
      %p67 = por %p65, %p66
      %p68 = scmp.ne.s32.totalorder %s57, %s58
      %p69 = scmp.eq.s32.totalorder %s28, 0
      %p70 = por %p68, %p69
      %p71 = scmp.ne.s32.totalorder %s57, %s58
      %p72 = scmp.eq.s32.totalorder %s29, 1
      %p73 = por %p71, %p72
      %p75 = scmp.ne.s32.totalorder %s58, %s74
      %p76 = scmp.eq.s32.totalorder %s29, 0
      %p77 = por %p75, %p76
      %s79 = sadd.s32 %s78, 1
      %p82 = scmp.eq.s32.totalorder %s23, 1
      %p83 = scmp.ne.s32.totalorder %s78, %s80
      %p84 = scmp.eq.s32.totalorder %s23, 0
      %p85 = por %p83, %p84
      %p86 = scmp.ne.s32.totalorder %s78, %s80
      %p87 = scmp.eq.s32.totalorder %s28, 1
      %p88 = por %p86, %p87
      %p89 = scmp.ne.s32.totalorder %s80, %s81
      %p90 = scmp.eq.s32.totalorder %s28, 0
      %p91 = por %p89, %p90
      %p92 = scmp.ne.s32.totalorder %s80, %s81
      %p93 = scmp.eq.s32.totalorder %s29, 1
      %p94 = por %p92, %p93
      %p96 = scmp.ne.s32.totalorder %s81, %s95
      %p97 = scmp.eq.s32.totalorder %s29, 0
      %p98 = por %p96, %p97
      %s100 = sadd.s32 %s99, 1
      %p103 = scmp.eq.s32.totalorder %s23, 1
      %p104 = scmp.ne.s32.totalorder %s99, %s101
      %p105 = scmp.eq.s32.totalorder %s23, 0
      %p106 = por %p104, %p105
      %p107 = scmp.ne.s32.totalorder %s99, %s101
      %p108 = scmp.eq.s32.totalorder %s28, 1
      %p109 = por %p107, %p108
      %p110 = scmp.ne.s32.totalorder %s101, %s102
      %p111 = scmp.eq.s32.totalorder %s28, 0
      %p112 = por %p110, %p111
      %p113 = scmp.ne.s32.totalorder %s101, %s102
      %p114 = scmp.eq.s32.totalorder %s29, 1
      %p115 = por %p113, %p114
      %p117 = scmp.ne.s32.totalorder %s102, %s116
      %p118 = scmp.eq.s32.totalorder %s29, 0
      %p119 = por %p117, %p118
      %s121 = sadd.s32 %s120, 1
      %p124 = scmp.eq.s32.totalorder %s23, 1
      %p125 = scmp.ne.s32.totalorder %s120, %s122
      %p126 = scmp.eq.s32.totalorder %s23, 0
      %p127 = por %p125, %p126
      %p128 = scmp.ne.s32.totalorder %s120, %s122
      %p129 = scmp.eq.s32.totalorder %s28, 1
      %p130 = por %p128, %p129
      %p131 = scmp.ne.s32.totalorder %s122, %s123
      %p132 = scmp.eq.s32.totalorder %s28, 0
      %p133 = por %p131, %p132
      %p134 = scmp.ne.s32.totalorder %s122, %s123
      %p135 = scmp.eq.s32.totalorder %s29, 1
      %p136 = por %p134, %p135
      %p138 = scmp.ne.s32.totalorder %s123, %s137
      %p139 = scmp.eq.s32.totalorder %s29, 0
      %p140 = por %p138, %p139
      %s142 = sadd.s32 %s141, 1
      %p145 = scmp.eq.s32.totalorder %s23, 1
      %p146 = scmp.ne.s32.totalorder %s141, %s143
      %p147 = scmp.eq.s32.totalorder %s23, 0
      %p148 = por %p146, %p147
      %p149 = scmp.ne.s32.totalorder %s141, %s143
      %p150 = scmp.eq.s32.totalorder %s28, 1
      %p151 = por %p149, %p150
      %p152 = scmp.ne.s32.totalorder %s143, %s144
      %p153 = scmp.eq.s32.totalorder %s28, 0
      %p154 = por %p152, %p153
      %p155 = scmp.ne.s32.totalorder %s143, %s144
      %p156 = scmp.eq.s32.totalorder %s29, 1
      %p157 = por %p155, %p156
      %p159 = scmp.ne.s32.totalorder %s144, %s158
      %p160 = scmp.eq.s32.totalorder %s29, 0
      %p161 = por %p159, %p160
      %s163 = sadd.s32 %s162, 1
      %p166 = scmp.eq.s32.totalorder %s23, 1
      %p167 = scmp.ne.s32.totalorder %s162, %s164
      %p168 = scmp.eq.s32.totalorder %s23, 0
      %p169 = por %p167, %p168
      %p170 = scmp.ne.s32.totalorder %s162, %s164
      %p171 = scmp.eq.s32.totalorder %s28, 1
      %p172 = por %p170, %p171
      %p173 = scmp.ne.s32.totalorder %s164, %s165
      %p174 = scmp.eq.s32.totalorder %s28, 0
      %p175 = por %p173, %p174
      %p176 = scmp.ne.s32.totalorder %s164, %s165
      %p177 = scmp.eq.s32.totalorder %s29, 1
      %p178 = por %p176, %p177
      %p180 = scmp.ne.s32.totalorder %s165, %s179
      %p181 = scmp.eq.s32.totalorder %s29, 0
      %p182 = por %p180, %p181
      %s184 = sadd.s32 %s183, 1
      %p187 = scmp.eq.s32.totalorder %s23, 1
      %p188 = scmp.ne.s32.totalorder %s183, %s185
      %p189 = scmp.eq.s32.totalorder %s23, 0
      %p190 = por %p188, %p189
      %p191 = scmp.ne.s32.totalorder %s183, %s185
      %p192 = scmp.eq.s32.totalorder %s28, 1
      %p193 = por %p191, %p192
      %p194 = scmp.ne.s32.totalorder %s185, %s186
      %p195 = scmp.eq.s32.totalorder %s28, 0
      %p196 = por %p194, %p195
      %p197 = scmp.ne.s32.totalorder %s185, %s186
      %p198 = scmp.eq.s32.totalorder %s29, 1
      %p199 = por %p197, %p198
      %p201 = scmp.ne.s32.totalorder %s186, %s200
      %p202 = scmp.eq.s32.totalorder %s29, 0
      %p203 = por %p201, %p202
      %s205 = sadd.s32 %s204, 1
      %p208 = scmp.eq.s32.totalorder %s23, 1
      %p209 = scmp.ne.s32.totalorder %s204, %s206
      %p210 = scmp.eq.s32.totalorder %s23, 0
      %p211 = por %p209, %p210
      %p212 = scmp.ne.s32.totalorder %s204, %s206
      %p213 = scmp.eq.s32.totalorder %s28, 1
      %p214 = por %p212, %p213
      %p215 = scmp.ne.s32.totalorder %s206, %s207
      %p216 = scmp.eq.s32.totalorder %s28, 0
      %p217 = por %p215, %p216
      %p218 = scmp.ne.s32.totalorder %s206, %s207
      %p219 = scmp.eq.s32.totalorder %s29, 1
      %p220 = por %p218, %p219
      %p222 = scmp.ne.s32.totalorder %s207, %s221
      %p223 = scmp.eq.s32.totalorder %s29, 0
      %p224 = por %p222, %p223
      %s226 = sadd.s32 %s225, 1
      %p229 = scmp.eq.s32.totalorder %s23, 1
      %p230 = scmp.ne.s32.totalorder %s225, %s227
      %p231 = scmp.eq.s32.totalorder %s23, 0
      %p232 = por %p230, %p231
      %p233 = scmp.ne.s32.totalorder %s225, %s227
      %p234 = scmp.eq.s32.totalorder %s28, 1
      %p235 = por %p233, %p234
      %p236 = scmp.ne.s32.totalorder %s227, %s228
      %p237 = scmp.eq.s32.totalorder %s28, 0
      %p238 = por %p236, %p237
      %p239 = scmp.ne.s32.totalorder %s227, %s228
      %p240 = scmp.eq.s32.totalorder %s29, 1
      %p241 = por %p239, %p240
      %p243 = scmp.ne.s32.totalorder %s228, %s242
      %p244 = scmp.eq.s32.totalorder %s29, 0
      %p245 = por %p243, %p244
      %s247 = sadd.s32 %s246, 1
      %p250 = scmp.eq.s32.totalorder %s23, 1
      %p251 = scmp.ne.s32.totalorder %s246, %s248
      %p252 = scmp.eq.s32.totalorder %s23, 0
      %p253 = por %p251, %p252
      %p254 = scmp.ne.s32.totalorder %s246, %s248
      %p255 = scmp.eq.s32.totalorder %s28, 1
      %p256 = por %p254, %p255
      %p257 = scmp.ne.s32.totalorder %s248, %s249
      %p258 = scmp.eq.s32.totalorder %s28, 0
      %p259 = por %p257, %p258
      %p260 = scmp.ne.s32.totalorder %s248, %s249
      %p261 = scmp.eq.s32.totalorder %s29, 1
      %p262 = por %p260, %p261
      %p264 = scmp.ne.s32.totalorder %s249, %s263
      %p265 = scmp.eq.s32.totalorder %s29, 0
      %p266 = por %p264, %p265
      %s268 = sadd.s32 %s267, 1
      %p271 = scmp.eq.s32.totalorder %s23, 1
      %p272 = scmp.ne.s32.totalorder %s267, %s269
      %p273 = scmp.eq.s32.totalorder %s23, 0
      %p274 = por %p272, %p273
      %p275 = scmp.ne.s32.totalorder %s267, %s269
      %p276 = scmp.eq.s32.totalorder %s28, 1
      %p277 = por %p275, %p276
      %p278 = scmp.ne.s32.totalorder %s269, %s270
      %p279 = scmp.eq.s32.totalorder %s28, 0
      %p280 = por %p278, %p279
      %p281 = scmp.ne.s32.totalorder %s269, %s270
      %p282 = scmp.eq.s32.totalorder %s29, 1
      %p283 = por %p281, %p282
      %p285 = scmp.ne.s32.totalorder %s270, %s284
      %p286 = scmp.eq.s32.totalorder %s29, 0
      %p287 = por %p285, %p286
      %p288 = scmp.le.s32.totalorder 1, %s23
      %p289 = scmp.lt.s32.totalorder %s23, 3
      %p290 = pnand %p288, %p289
      %p291 = pneg %p290
      // Predicated region
      $region9: #{tpu_custom_call.1} parent=5 // pred_check
        _
      $region10: #{tpu_custom_call.1} parent=5 // pred_check_branch
        %293 = sbr.rel (%p290) target = $region12
      $region11: #{tpu_custom_call.1} parent=5 // pred_region
        %s294 = ssub.s32 %s23, 1
        // Predicated region
        $region13: #{tpu_custom_call.1} parent=11 // pred_check
          %p295 = pneg %p44
        $region14: #{tpu_custom_call.1} parent=11 // pred_check_branch
          %297 = sbr.rel (%p295) target = $region16
        $region15: #{tpu_custom_call.1} parent=11 // pred_region
          _
        $region16: #{tpu_custom_call.1} parent=11 // pred_fallthru
          _
        // Predicated region
        $region17: #{tpu_custom_call.1} parent=11 // pred_check
          %p298 = pneg %p91
        $region18: #{tpu_custom_call.1} parent=11 // pred_check_branch
          %300 = sbr.rel (%p298) target = $region20
        $region19: #{tpu_custom_call.1} parent=11 // pred_region
          %302 = vsyncadd [#allocation6], 0
          %s304 = sshll.u32 %s2, 4
          %s305 = int_to_ptr.hbm [resolvable:$true] %s304
          %s306 = sshll.u32 [#allocation5], 4
          %s307 = int_to_ptr.vmem [resolvable:$true] %s306
          %309 = dma.hbm_to_vmem [thread:$0]  %s305, 128, %s307, [#allocation6]
        $region20: #{tpu_custom_call.1} parent=11 // pred_fallthru
          _
        // Predicated region
        $region21: #{tpu_custom_call.1} parent=11 // pred_check
          %p310 = pneg %p112
        $region22: #{tpu_custom_call.1} parent=11 // pred_check_branch
          %312 = sbr.rel (%p310) target = $region24
        $region23: #{tpu_custom_call.1} parent=11 // pred_region
          %314 = vsyncadd [#allocation6], 0
          %s316 = sshll.u32 %s3, 4
          %s317 = int_to_ptr.hbm [resolvable:$true] %s316
          %s318 = sshll.u32 [#allocation7], 4
          %s319 = int_to_ptr.vmem [resolvable:$true] %s318
          %321 = dma.hbm_to_vmem [thread:$0]  %s317, 16, %s319, [#allocation6]
        $region24: #{tpu_custom_call.1} parent=11 // pred_fallthru
          _
        // Predicated region
        $region25: #{tpu_custom_call.1} parent=11 // pred_check
          %p322 = pneg %p133
        $region26: #{tpu_custom_call.1} parent=11 // pred_check_branch
          %324 = sbr.rel (%p322) target = $region28
        $region27: #{tpu_custom_call.1} parent=11 // pred_region
          _
        $region28: #{tpu_custom_call.1} parent=11 // pred_fallthru
          _
        // Predicated region
        $region29: #{tpu_custom_call.1} parent=11 // pred_check
          %p325 = pneg %p154
        $region30: #{tpu_custom_call.1} parent=11 // pred_check_branch
          %327 = sbr.rel (%p325) target = $region32
        $region31: #{tpu_custom_call.1} parent=11 // pred_region
          %329 = vsyncadd [#allocation9], 0
          %s331 = sshll.u32 %s5, 4
          %s332 = int_to_ptr.hbm [resolvable:$true] %s331
          %s333 = sshll.u32 [#allocation8], 4
          %s334 = int_to_ptr.vmem [resolvable:$true] %s333
          %336 = dma.hbm_to_vmem [thread:$0]  %s332, 16, %s334, [#allocation9]
        $region32: #{tpu_custom_call.1} parent=11 // pred_fallthru
          _
        // Predicated region
        $region33: #{tpu_custom_call.1} parent=11 // pred_check
          %p337 = pneg %p175
        $region34: #{tpu_custom_call.1} parent=11 // pred_check_branch
          %339 = sbr.rel (%p337) target = $region36
        $region35: #{tpu_custom_call.1} parent=11 // pred_region
          _
        $region36: #{tpu_custom_call.1} parent=11 // pred_fallthru
          _
        // Predicated region
        $region37: #{tpu_custom_call.1} parent=11 // pred_check
          %p340 = pneg %p196
        $region38: #{tpu_custom_call.1} parent=11 // pred_check_branch
          %342 = sbr.rel (%p340) target = $region40
        $region39: #{tpu_custom_call.1} parent=11 // pred_region
          _
        $region40: #{tpu_custom_call.1} parent=11 // pred_fallthru
          _
        // Predicated region
        $region41: #{tpu_custom_call.1} parent=11 // pred_check
          %p343 = pneg %p217
        $region42: #{tpu_custom_call.1} parent=11 // pred_check_branch
          %345 = sbr.rel (%p343) target = $region44
        $region43: #{tpu_custom_call.1} parent=11 // pred_region
          _
        $region44: #{tpu_custom_call.1} parent=11 // pred_fallthru
          _
        // Predicated region
        $region45: #{tpu_custom_call.1} parent=11 // pred_check
          %p346 = pneg %p238
        $region46: #{tpu_custom_call.1} parent=11 // pred_check_branch
          %348 = sbr.rel (%p346) target = $region48
        $region47: #{tpu_custom_call.1} parent=11 // pred_region
          _
        $region48: #{tpu_custom_call.1} parent=11 // pred_fallthru
          _
      $region12: #{tpu_custom_call.1} parent=5 // pred_fallthru
        _
      %p349 = scmp.lt.s32.totalorder %s23, 2
      // Predicated region
      $region49: #{tpu_custom_call.1} parent=5 // pred_check
        %p350 = pneg %p349
      $region50: #{tpu_custom_call.1} parent=5 // pred_check_branch
        %352 = sbr.rel (%p350) target = $region52
      $region51: #{tpu_custom_call.1} parent=5 // pred_region
        // Predicated region
        $region53: #{tpu_custom_call.1} parent=51 // pred_check
          %p353 = pneg %p64
        $region54: #{tpu_custom_call.1} parent=51 // pred_check_branch
          %355 = sbr.rel (%p353) target = $region56
        $region55: #{tpu_custom_call.1} parent=51 // pred_region
          %s356 = sand.u32 %s54, 1
          %s357 = scalar_lea.sflag [#allocation4], %s356
          %s358 = sand.u32 %s54, 1
          %s359 = smul.addr %s358, 4
          %s360 = scalar_lea.vmem [#allocation3], %s359
          %362 = vsyncadd %s357, 0
          %s363 = smul.addr %s23, 4
          %s364 = scalar_lea.hbm %s1, %s363
          %s366 = sshll.u32 %s364, 4
          %s367 = int_to_ptr.hbm [resolvable:$true] %s366
          %s368 = sshll.u32 %s360, 4
          %s369 = int_to_ptr.vmem [resolvable:$true] %s368
          %371 = dma.hbm_to_vmem [thread:$0]  %s367, 64, %s369, %s357
        $region56: #{tpu_custom_call.1} parent=51 // pred_fallthru
          _
      $region52: #{tpu_custom_call.1} parent=5 // pred_fallthru
        _
      %p372 = scmp.le.s32.totalorder 1, %s23
      %p373 = scmp.lt.s32.totalorder %s23, 3
      %p374 = pnand %p372, %p373
      %p375 = pneg %p374
      // Predicated region
      $region57: #{tpu_custom_call.1} parent=5 // pred_check
        _
      $region58: #{tpu_custom_call.1} parent=5 // pred_check_branch
        %377 = sbr.rel (%p374) target = $region60
      $region59: #{tpu_custom_call.1} parent=5 // pred_region
        %s378 = ssub.s32 %s23, 1
        %s379 = sand.u32 %s57, 1
        %s380 = scalar_lea.sflag [#allocation4], %s379
        %s381 = sand.u32 %s57, 1
        %s382 = smul.addr %s381, 4
        %s383 = scalar_lea.vmem [#allocation3], %s382
        // Predicated region
        $region61: #{tpu_custom_call.1} parent=59 // pred_check
          %p384 = pneg %p70
        $region62: #{tpu_custom_call.1} parent=59 // pred_check_branch
          %386 = sbr.rel (%p384) target = $region64
        $region63: #{tpu_custom_call.1} parent=59 // pred_region
          %388 = dma.done %s380, 64
        $region64: #{tpu_custom_call.1} parent=59 // pred_fallthru
          _
        // Predicated region
        $region65: #{tpu_custom_call.1} parent=59 // pred_check
          %p389 = pneg %p91
        $region66: #{tpu_custom_call.1} parent=59 // pred_check_branch
          %391 = sbr.rel (%p389) target = $region68
        $region67: #{tpu_custom_call.1} parent=59 // pred_region
          %393 = dma.done [#allocation6], 128
        $region68: #{tpu_custom_call.1} parent=59 // pred_fallthru
          _
        // Predicated region
        $region69: #{tpu_custom_call.1} parent=59 // pred_check
          %p394 = pneg %p112
        $region70: #{tpu_custom_call.1} parent=59 // pred_check_branch
          %396 = sbr.rel (%p394) target = $region72
        $region71: #{tpu_custom_call.1} parent=59 // pred_region
          %398 = dma.done [#allocation6], 16
        $region72: #{tpu_custom_call.1} parent=59 // pred_fallthru
          _
        // Predicated region
        $region73: #{tpu_custom_call.1} parent=59 // pred_check
          %p399 = pneg %p154
        $region74: #{tpu_custom_call.1} parent=59 // pred_check_branch
          %401 = sbr.rel (%p399) target = $region76
        $region75: #{tpu_custom_call.1} parent=59 // pred_region
          %403 = dma.done [#allocation9], 16
        $region76: #{tpu_custom_call.1} parent=59 // pred_fallthru
          _
        %p404 = pneg %p44
        %p405 = pneg %p41
        %s406 = sand.u32 %s57, 1
        %s407 = scalar_lea.sflag [#allocation4], %s406
        %s408 = sand.u32 %s57, 1
        %s409 = smul.addr %s408, 4
        %s410 = scalar_lea.vmem [#allocation3], %s409
        %p411 = pneg %p70
        %p412 = pneg %p67
        %p413 = pneg %p91
        %p414 = pneg %p88
        %p415 = pneg %p112
        %p416 = pneg %p109
        %p417 = pneg %p133
        %p418 = pneg %p130
        %p419 = pneg %p154
        %p420 = pneg %p151
        %p421 = pneg %p175
        %p422 = pneg %p172
        %p423 = pneg %p196
        %p424 = pneg %p193
        %p425 = pneg %p217
        %p426 = pneg %p214
        %p427 = pneg %p238
        %p428 = pneg %p235
        %p429 = pneg %p259
        %p430 = pneg %p256
        %p431 = pneg %p280
        %p432 = pneg %p277
        %p433 = scmp.eq.s32.totalorder %s28, 0
        // Predicated region
        $region77: #{tpu_custom_call.1} parent=59 // pred_check
          %p434 = pneg %p433
        $region78: #{tpu_custom_call.1} parent=59 // pred_check_branch
          %436 = sbr.rel (%p434) target = $region80
        $region79: #{tpu_custom_call.1} parent=59 // pred_region
          %vm437 = vcmask 60416
          %438 = vst.msk [vmem:[#allocation2] sm:$0xf] %vm437, 0.0
        $region80: #{tpu_custom_call.1} parent=59 // pred_fallthru
          _
        %v439 = vld [vmem:[%s0] sm:$0xff]
        %v440 = vcvt.f32.s32.to.zero.pseudo %v439
        %v441 = vadd.s32 %v440, 1
        %vm442 = vcmp.gt.s32.totalorder %v440, 0
        %v443 = vsel %vm442, %v440, 0
        %vm444 = vcmp.lt.s32.totalorder %v443, 15
        %v445 = vsel %vm444, %v443, 15
        %vm446 = vcmp.gt.s32.totalorder %v441, 0
        %v447 = vsel %vm446, %v441, 0
        %vm448 = vcmp.lt.s32.totalorder %v447, 15
        %v449 = vsel %vm448, %v447, 15
        %v450 = vcvt.s32.f32 %v445
        %v451 = vsub.f32 %v439, %v450
        %v452 = vsub.f32 1.0, %v451
        %454 = vrot.lane.b32.xlu0 %v452, 127
        %v455 = vpop.permute.xlu0 %454
        %v457 = vmul.f32 %v452, %v455
        %v458 = vmul.f32 %v451, %v455
        %460 = vrot.lane.b32.xlu0 %v451, 127
        %v461 = vpop.permute.xlu0 %460
        %v463 = vmul.f32 %v452, %v461
        %v464 = vmul.f32 %v451, %v461
        %v465 = vmul.u32 %v445, 16
        %466 = vrot.lane.b32.xlu0 %v445, 127
        %v467 = vpop.permute.xlu0 %466
        %v468 = vadd.s32 %v465, %v467
        %v469 = vmul.u32 %v449, 16
        %v470 = vadd.s32 %v469, %v467
        %471 = vrot.lane.b32.xlu0 %v449, 127
        %v472 = vpop.permute.xlu0 %471
        %v473 = vadd.s32 %v465, %v472
        %v474 = vadd.s32 %v469, %v472
        %v475 = vlaneseq
        %v476 = vand.u32 %v475, 127
        %s477 = smul.u32 %s28, 128
        %v478 = vstv %s477
        %v479 = vadd.s32 %v476, %v478
        %480 = vset.pattern.permute.xlu0 0
        %481 = vperm.xlu0 %480, %v468
        %v482 = vpop.permute.xlu0 %481
        %vm483 = vcmp.eq.s32.totalorder %v479, %v482
        %v484 = vsel %vm483, 1, 0
        %v485 = vcvt.s32.f32 %v484
        %487 = vset.pattern.permute.xlu0 0
        %488 = vperm.xlu0 %487, %v457
        %v489 = vpop.permute.xlu0 %488
        %v491 = vmul.f32 %v485, %v489
        %492 = vset.pattern.permute.xlu0 0
        %493 = vperm.xlu0 %492, %v470
        %v494 = vpop.permute.xlu0 %493
        %vm495 = vcmp.eq.s32.totalorder %v479, %v494
        %v496 = vsel %vm495, 1, 0
        %v497 = vcvt.s32.f32 %v496
        %499 = vset.pattern.permute.xlu0 0
        %500 = vperm.xlu0 %499, %v458
        %v501 = vpop.permute.xlu0 %500
        %v503 = vmul.f32 %v497, %v501
        %v504 = vadd.f32 %v491, %v503
        %505 = vset.pattern.permute.xlu0 0
        %506 = vperm.xlu0 %505, %v473
        %v507 = vpop.permute.xlu0 %506
        %vm508 = vcmp.eq.s32.totalorder %v479, %v507
        %v509 = vsel %vm508, 1, 0
        %v510 = vcvt.s32.f32 %v509
        %512 = vset.pattern.permute.xlu0 0
        %513 = vperm.xlu0 %512, %v463
        %v514 = vpop.permute.xlu0 %513
        %v516 = vmul.f32 %v510, %v514
        %v517 = vadd.f32 %v504, %v516
        %518 = vset.pattern.permute.xlu0 0
        %519 = vperm.xlu0 %518, %v474
        %v520 = vpop.permute.xlu0 %519
        %vm521 = vcmp.eq.s32.totalorder %v479, %v520
        %v522 = vsel %vm521, 1, 0
        %v523 = vcvt.s32.f32 %v522
        %525 = vset.pattern.permute.xlu0 0
        %526 = vperm.xlu0 %525, %v464
        %v527 = vpop.permute.xlu0 %526
        %v529 = vmul.f32 %v523, %v527
        %v530 = vadd.f32 %v517, %v529
        %v531 = vld [vmem:[#allocation2] sm:$0xf]
        %v532 = vld [vmem:[%s383] sm:$0xf]
        %533 = vmatpush.xpose.msra.mxu0 0.0
        %534 = vmatpush.xpose.msra.mxu0 0.0
        %535 = vmatpush.xpose.msra.mxu0 0.0
        %536 = vmatpush.xpose.msra.mxu0 0.0
        %537 = vmatpush.xpose.msra.mxu0 0.0
        %538 = vmatpush.xpose.msra.mxu0 0.0
        %539 = vmatpush.xpose.msra.mxu0 0.0
        %540 = vmatpush.xpose.msra.mxu0 0.0
        %541 = vmatpush.xpose.msra.mxu0 0.0
        %542 = vmatpush.xpose.msra.mxu0 0.0
        %543 = vmatpush.xpose.msra.mxu0 0.0
        %544 = vmatpush.xpose.msra.mxu0 0.0
        %545 = vmatpush.xpose.msra.mxu0 0.0
        %546 = vmatpush.xpose.msra.mxu0 0.0
        %547 = vmatpush.xpose.msra.mxu0 0.0
        %548 = vmatpush.xpose.msra.mxu0 %v530
        %549 = vmatmul.f32.gmra.mxu0 %v532
        %v550 = vpop.f32.mrf.mxu0
        %v551 = vadd.f32 0.0, %v550
        %552 = vdwg.mxu0
        %v553 = vadd.f32 %v531, %v551
        %vm554 = vcmask 60416
        %555 = vst.msk [vmem:[#allocation2] sm:$0xf] %vm554, %v553
        %p556 = scmp.eq.s32.totalorder %s28, 1
        // Predicated region
        $region81: #{tpu_custom_call.1} parent=59 // pred_check
          %p557 = pneg %p556
        $region82: #{tpu_custom_call.1} parent=59 // pred_check_branch
          %559 = sbr.rel (%p557) target = $region84
        $region83: #{tpu_custom_call.1} parent=59 // pred_region
          %v560 = vld [vmem:[#allocation2] sm:$0x1]
          %v561 = vld [vmem:[#allocation2 + $0x1] sm:$0x1]
          %v562 = vld [vmem:[#allocation2 + $0x2] sm:$0x1]
          %v563 = vld [vmem:[#allocation2 + $0x3] sm:$0x1]
          %565 = vrot.lane.b32.xlu0 %v561, 8
          %v566 = vpop.permute.xlu0 %565
          %569 = vrot.lane.b32.xlu0 %v562, 16
          %v570 = vpop.permute.xlu0 %569
          %573 = vrot.lane.b32.xlu0 %v563, 24
          %v574 = vpop.permute.xlu0 %573
          %vm576 = vcmask 64512
          %v577 = vsel %vm576, %v560, %v566
          %vm578 = vcmask 130048
          %v579 = vsel %vm578, %v577, %v570
          %vm580 = vcmask 195584
          %v581 = vsel %vm580, %v579, %v574
          %vm582 = vcmask 24576
          %583 = vst.msk [vmem:[%s10] sm:$0x1] %vm582, %v581
          %585 = vrot.lane.b32.xlu0 %v581, 124
          %v586 = vpop.permute.xlu0 %585
          %588 = vst.msk [vmem:[%s10 + $0x1] sm:$0x1] %vm582, %v586
          %589 = vrot.lane.b32.xlu0 %v581, 120
          %v590 = vpop.permute.xlu0 %589
          %592 = vst.msk [vmem:[%s10 + $0x2] sm:$0x1] %vm582, %v590
          %593 = vrot.lane.b32.xlu0 %v581, 116
          %v594 = vpop.permute.xlu0 %593
          %596 = vst.msk [vmem:[%s10 + $0x3] sm:$0x1] %vm582, %v594
          %597 = vrot.lane.b32.xlu0 %v581, 112
          %v598 = vpop.permute.xlu0 %597
          %600 = vst.msk [vmem:[%s10 + $0x4] sm:$0x1] %vm582, %v598
          %601 = vrot.lane.b32.xlu0 %v581, 108
          %v602 = vpop.permute.xlu0 %601
          %604 = vst.msk [vmem:[%s10 + $0x5] sm:$0x1] %vm582, %v602
          %605 = vrot.lane.b32.xlu0 %v581, 104
          %v606 = vpop.permute.xlu0 %605
          %608 = vst.msk [vmem:[%s10 + $0x6] sm:$0x1] %vm582, %v606
          %609 = vrot.lane.b32.xlu0 %v581, 100
          %v610 = vpop.permute.xlu0 %609
          %612 = vst.msk [vmem:[%s10 + $0x7] sm:$0x1] %vm582, %v610
          %v613 = vld [vmem:[%s10] sm:$0xff]
          %v614 = vld [vmem:[%s0] sm:$0xff]
          %616 = vrot.lane.b32.xlu0 %v613, 3
          %v617 = vpop.permute.xlu0 %616
          %vm619 = vcmask 23552
          %v620 = vsel %vm619, %v614, %v617
          %v621 = vld [vmem:[#allocation5] sm:$0x7f]
          %v622 = vld [vmem:[#allocation7] sm:$0x1]
          %v624 = vperm.slane %v622, 0
          %vm626 = vcmask 56320
          %v628 = vsel %vm626, %v620, 0
          %vm630 = vcmask 1046528
          %v632 = vsel %vm630, %v621, 0
          %634 = vmatpush.msra.mxu0 0.0
          %635 = vmatpush.msra.mxu0 0.0
          %636 = vmatpush.msra.mxu0 0.0
          %637 = vmatpush.msra.mxu0 0.0
          %638 = vmatpush.msra.mxu0 0.0
          %639 = vmatpush.msra.mxu0 0.0
          %640 = vmatpush.msra.mxu0 0.0
          %641 = vmatpush.msra.mxu0 0.0
          %642 = vmatpush.msra.mxu0 0.0
          %643 = vmatpush.msra.mxu0 0.0
          %644 = vmatpush.msra.mxu0 0.0
          %645 = vmatpush.msra.mxu0 0.0
          %646 = vmatpush.msra.mxu0 0.0
          %647 = vmatpush.msra.mxu0 0.0
          %648 = vmatpush.msra.mxu0 0.0
          %649 = vmatpush.msra.mxu0 %v632
          %650 = vmatmul.f32.gmra.mxu0 %v628
          %v651 = vpop.f32.mrf.mxu0
          %v652 = vadd.f32 %v624, %v651
          %653 = vdwg.mxu0
          %v654 = vld [vmem:[%s4] sm:$0xff]
          %v655 = vld [vmem:[%s4 + $0x8] sm:$0xff]
          %v656 = vld [vmem:[#allocation8] sm:$0x1]
          %v658 = vperm.slane %v656, 0
          %v661 = vsel %vm578, %v652, 0
          %663 = vmatpush.msra.mxu0 0.0
          %664 = vmatpush.msra.mxu0 0.0
          %665 = vmatpush.msra.mxu0 0.0
          %666 = vmatpush.msra.mxu0 0.0
          %667 = vmatpush.msra.mxu0 0.0
          %668 = vmatpush.msra.mxu0 0.0
          %669 = vmatpush.msra.mxu0 0.0
          %670 = vmatpush.msra.mxu0 0.0
          %671 = vmatpush.msra.mxu0 0.0
          %672 = vmatpush.msra.mxu0 0.0
          %673 = vmatpush.msra.mxu0 0.0
          %674 = vmatpush.msra.mxu0 0.0
          %675 = vmatpush.msra.mxu0 0.0
          %676 = vmatpush.msra.mxu0 0.0
          %677 = vmatpush.msra.mxu0 %v655
          %678 = vmatpush.msra.mxu0 %v654
          %679 = vmatmul.f32.gmra.mxu0 %v661
          %v680 = vpop.f32.mrf.mxu0
          %v681 = vadd.f32 %v658, %v680
          %682 = vdwg.mxu0
          %v683 = vadd.f32 %v681, %v652
          %v684 = vld [vmem:[%s6] sm:$0xff]
          %v685 = vld [vmem:[%s6 + $0x8] sm:$0xff]
          %v686 = vld [vmem:[%s7] sm:$0x1]
          %v688 = vperm.slane %v686, 0
          %v691 = vsel %vm578, %v683, 0
          %693 = vmatpush.msra.mxu0 0.0
          %694 = vmatpush.msra.mxu0 0.0
          %695 = vmatpush.msra.mxu0 0.0
          %696 = vmatpush.msra.mxu0 0.0
          %697 = vmatpush.msra.mxu0 0.0
          %698 = vmatpush.msra.mxu0 0.0
          %699 = vmatpush.msra.mxu0 0.0
          %700 = vmatpush.msra.mxu0 0.0
          %701 = vmatpush.msra.mxu0 0.0
          %702 = vmatpush.msra.mxu0 0.0
          %703 = vmatpush.msra.mxu0 0.0
          %704 = vmatpush.msra.mxu0 0.0
          %705 = vmatpush.msra.mxu0 0.0
          %706 = vmatpush.msra.mxu0 0.0
          %707 = vmatpush.msra.mxu0 %v685
          %708 = vmatpush.msra.mxu0 %v684
          %709 = vmatmul.f32.gmra.mxu0 %v691
          %v710 = vpop.f32.mrf.mxu0
          %v711 = vadd.f32 %v688, %v710
          %712 = vdwg.mxu0
          %v713 = vmax.f32 %v711, 0.0
          %v714 = vld [vmem:[%s8] sm:$0xff]
          %v715 = vld [vmem:[%s8 + $0x8] sm:$0xff]
          %v716 = vld [vmem:[%s9] sm:$0x1]
          %v718 = vperm.slane %v716, 0
          %v721 = vsel %vm578, %v713, 0
          %723 = vmatpush.msra.mxu0 0.0
          %724 = vmatpush.msra.mxu0 0.0
          %725 = vmatpush.msra.mxu0 0.0
          %726 = vmatpush.msra.mxu0 0.0
          %727 = vmatpush.msra.mxu0 0.0
          %728 = vmatpush.msra.mxu0 0.0
          %729 = vmatpush.msra.mxu0 0.0
          %730 = vmatpush.msra.mxu0 0.0
          %731 = vmatpush.msra.mxu0 0.0
          %732 = vmatpush.msra.mxu0 0.0
          %733 = vmatpush.msra.mxu0 0.0
          %734 = vmatpush.msra.mxu0 0.0
          %735 = vmatpush.msra.mxu0 0.0
          %736 = vmatpush.msra.mxu0 0.0
          %737 = vmatpush.msra.mxu0 %v715
          %738 = vmatpush.msra.mxu0 %v714
          %739 = vmatmul.f32.gmra.mxu0 %v721
          %v740 = vpop.f32.mrf.mxu0
          %v741 = vadd.f32 %v718, %v740
          %742 = vdwg.mxu0
          %744 = vrot.lane.b32.xlu0 %v614, 2
          %v745 = vpop.permute.xlu0 %744
          %vm747 = vcmask 15360
          %v748 = vsel %vm747, %v614, %v745
          %v749 = vadd.f32 %v748, %v741
          %vm750 = vcmask 31744
          %751 = vst.msk [vmem:[%s11] sm:$0xff] %vm750, %v749
        $region84: #{tpu_custom_call.1} parent=59 // pred_fallthru
          _
        // Predicated region
        $region85: #{tpu_custom_call.1} parent=59 // pred_check
          %p752 = pneg %p256
        $region86: #{tpu_custom_call.1} parent=59 // pred_check_branch
          %754 = sbr.rel (%p752) target = $region88
        $region87: #{tpu_custom_call.1} parent=59 // pred_region
          _
        $region88: #{tpu_custom_call.1} parent=59 // pred_fallthru
          _
        // Predicated region
        $region89: #{tpu_custom_call.1} parent=59 // pred_check
          %p755 = pneg %p277
        $region90: #{tpu_custom_call.1} parent=59 // pred_check_branch
          %757 = sbr.rel (%p755) target = $region92
        $region91: #{tpu_custom_call.1} parent=59 // pred_region
          _
        $region92: #{tpu_custom_call.1} parent=59 // pred_fallthru
          _
        // Predicated region
        $region93: #{tpu_custom_call.1} parent=59 // pred_check
          %p758 = pneg %p256
        $region94: #{tpu_custom_call.1} parent=59 // pred_check_branch
          %760 = sbr.rel (%p758) target = $region96
        $region95: #{tpu_custom_call.1} parent=59 // pred_region
          _
        $region96: #{tpu_custom_call.1} parent=59 // pred_fallthru
          _
        // Predicated region
        $region97: #{tpu_custom_call.1} parent=59 // pred_check
          %p761 = pneg %p277
        $region98: #{tpu_custom_call.1} parent=59 // pred_check_branch
          %763 = sbr.rel (%p761) target = $region100
        $region99: #{tpu_custom_call.1} parent=59 // pred_region
          _
        $region100: #{tpu_custom_call.1} parent=59 // pred_fallthru
          _
      $region60: #{tpu_custom_call.1} parent=5 // pred_fallthru
        _
      %p764 = scmp.le.s32.totalorder 2, %s23
      // Predicated region
      $region101: #{tpu_custom_call.1} parent=5 // pred_check
        %p765 = pneg %p764
      $region102: #{tpu_custom_call.1} parent=5 // pred_check_branch
        %767 = sbr.rel (%p765) target = $region104
      $region103: #{tpu_custom_call.1} parent=5 // pred_region
        %s768 = ssub.s32 %s23, 2
      $region104: #{tpu_custom_call.1} parent=5 // pred_fallthru
        _
    $region6: #{tpu_custom_call.1} parent=1 // loop_footer
      %s27 = sadd.s32 1, %s23
    $region7: #{tpu_custom_call.1} parent=1 // loop_footer_branch
      %22 = sbr.rel target = $region3
    $region8: #{tpu_custom_call.1} parent=1 // loop_exit
      _
    %769 = vsyncpa [#allocation4], 1
    %s770 = scalar_lea.sflag [#allocation4], 1
    %771 = vsyncpa %s770, 1
    %772 = vsyncpa [#allocation6], 1
    %773 = vsyncpa [#allocation9], 1

</llo_original>
